<compile_context>
chip_gen: v6e
topology: v6e:2x2x1
jax: 0.10.0
libtpu: 0.0.40
codegen_flags: <defaults>
</compile_context>

<pallas_src>
import jax
import jax.numpy as jnp
from jax.experimental import pallas as pl
from jax.experimental.pallas import tpu as pltpu

# ----------------------------- model dims -----------------------------------
B, C, H, W = 2, 4, 16, 16
D_IN = C * H * W            # 1024
HIDDEN = 128
SKETCH_DIM = 256            # image2sketch output
MOTION_DIM = 128            # motion_prediction output
IMAGE_DIM = 256             # sketch2image output
HEADS_DIM = SKETCH_DIM + MOTION_DIM + IMAGE_DIM   # 640 (fused heads)

_ROW_ALIGN = 16       # bf16 packs 2 rows/sublane -> keep trunk M-dim dense
_MAX_TB = 1024        # batch tile cap (fits the 32 MiB scoped VMEM on all gens)
_SPLIT_THRESH = 512   # above this, split into >=2 grid steps (both v7x TCs)


def _round_up(x, m):
    return ((x + m - 1) // m) * m


# ------------------------------ kernel ---------------------------------------
def mtl_kernel(x_ref, ws_ref, bs_ref, wh_ref, bh_ref, sk_ref, mo_ref, im_ref):
    # In-kernel bf16 cast of x (VPU) -- avoids a separate wrapper HBM cast pass.
    x_bf = x_ref[...].astype(jnp.bfloat16)

    # Shared trunk: Linear(D_IN, HIDDEN) + ReLU. bf16 x bf16 -> f32 accumulate.
    shared = jnp.dot(x_bf, ws_ref[...], preferred_element_type=jnp.float32)
    shared = jnp.maximum(shared + bs_ref[...], 0.0)

    # All three task heads as a single [HIDDEN, 640] MXU pass + fused bias.
    heads = jnp.dot(shared.astype(jnp.bfloat16), wh_ref[...],
                    preferred_element_type=jnp.float32)
    heads = heads + bh_ref[...]

    # Three lane-dense stores; slice points (256, 384) are multiples of 128,
    # so the lane slices are tile-aligned and the stores are unmasked.
    sk_ref[...] = heads[:, :SKETCH_DIM].astype(sk_ref.dtype)
    mo_ref[...] = heads[:, SKETCH_DIM:SKETCH_DIM + MOTION_DIM].astype(mo_ref.dtype)
    im_ref[...] = heads[:, SKETCH_DIM + MOTION_DIM:].astype(im_ref.dtype)


# --------------------------- param preparation --------------------------------
def prepare_params(params):
    """One-time (init-time) head fusion + bf16 weight cast.

    Hoisted out of the per-call path so the forward pass does not re-read /
    re-write ~1 MiB of weights through HBM on every invocation.
    """
    ws, bs, w_sk, b_sk, w_mo, b_mo, w_im, b_im = params
    w_heads = jnp.concatenate([w_sk, w_mo, w_im], axis=1)     # [HIDDEN, 640]
    b_heads = jnp.concatenate([b_sk, b_mo, b_im], axis=1)     # [1, 640]
    return (ws.astype(jnp.bfloat16),          # trunk W   (bf16 MXU operand)
            bs.astype(jnp.float32),           # trunk b   (f32)
            w_heads.astype(jnp.bfloat16),     # fused head W (bf16)
            b_heads.astype(jnp.float32))      # fused head b (f32)


# ------------------------------ wrapper ---------------------------------------
def multi_task_forward(x_nchw, fused_params):
    """x_nchw: [B, C, H, W] float32. Returns (sketch, motion, image) in f32."""
    ws_bf, bs_f, wh_bf, bh_f = fused_params
    b = x_nchw.shape[0]
    x2d = x_nchw.reshape(b, -1)               # nn.Flatten() (no copy)

    # Batch padding / tiling: align rows to 16; only pad when b is not already
    # a tile multiple; split moderate batches so >=2 grid steps exist (v7x).
    b_pad = _round_up(max(b, _ROW_ALIGN), _ROW_ALIGN)
    if b_pad > _MAX_TB:
        tb = _MAX_TB
    elif b_pad >= _SPLIT_THRESH:
        tb = _round_up((b_pad + 1) // 2, 256)
    else:
        tb = b_pad
    b_pad = _round_up(b_pad, tb)
    if b_pad != b:
        x2d = jnp.pad(x2d, ((0, b_pad - b), (0, 0)))
    n_tiles = b_pad // tb

    flops = 2 * b_pad * D_IN * HIDDEN + 2 * b_pad * HIDDEN * HEADS_DIM
    bytes_accessed = (b_pad * D_IN * 4                     # x (f32 read)
                      + ws_bf.size * 2 + wh_bf.size * 2    # bf16 weights
                      + bs_f.size * 4 + bh_f.size * 4      # f32 biases
                      + b_pad * HEADS_DIM * 4)             # f32 outputs

    out_shapes = (jax.ShapeDtypeStruct((b_pad, SKETCH_DIM), jnp.float32),
                  jax.ShapeDtypeStruct((b_pad, MOTION_DIM), jnp.float32),
                  jax.ShapeDtypeStruct((b_pad, IMAGE_DIM), jnp.float32))

    sketch, motion, image = pl.pallas_call(
        mtl_kernel,
        out_shape=out_shapes,
        grid=(n_tiles,),
        in_specs=[
            pl.BlockSpec((tb, D_IN), lambda i: (i, 0)),            # x tile (f32)
            pl.BlockSpec((D_IN, HIDDEN), lambda i: (0, 0)),        # trunk W (resident)
            pl.BlockSpec((1, HIDDEN), lambda i: (0, 0)),           # trunk b
            pl.BlockSpec((HIDDEN, HEADS_DIM), lambda i: (0, 0)),   # fused head W
            pl.BlockSpec((1, HEADS_DIM), lambda i: (0, 0)),        # fused head b
        ],
        out_specs=(
            pl.BlockSpec((tb, SKETCH_DIM), lambda i: (i, 0)),
            pl.BlockSpec((tb, MOTION_DIM), lambda i: (i, 0)),
            pl.BlockSpec((tb, IMAGE_DIM), lambda i: (i, 0)),
        ),
        compiler_params=pltpu.CompilerParams(
            dimension_semantics=("parallel",),
            vmem_limit_bytes=32 * 1024 * 1024),
        cost_estimate=pl.CostEstimate(
            flops=flops, transcendentals=0, bytes_accessed=bytes_accessed),
    )(x2d, ws_bf, bs_f, wh_bf, bh_f)

    if b_pad != b:
        # Padded rows hold ReLU(bias) @ W_heads garbage -- keep this slice.
        sketch, motion, image = sketch[:b], motion[:b], image[:b]
    return sketch, motion, image


# ------------------------------ params / reference ----------------------------
def init_params(key):
    """Deterministic parameter init (Kaiming-uniform-ish scaling like nn.Linear)."""
    ks = jax.random.split(key, 8)

    def linear(kw, kb, fan_in, fan_out):
        bound = 1.0 / jnp.sqrt(fan_in)
        w = jax.random.uniform(kw, (fan_in, fan_out), jnp.float32, -bound, bound)
        b = jax.random.uniform(kb, (1, fan_out), jnp.float32, -bound, bound)
        return w, b

    ws, bs = linear(ks[0], ks[1], D_IN, HIDDEN)
    w_sk, b_sk = linear(ks[2], ks[3], HIDDEN, SKETCH_DIM)
    w_mo, b_mo = linear(ks[4], ks[5], HIDDEN, MOTION_DIM)
    w_im, b_im = linear(ks[6], ks[7], HIDDEN, IMAGE_DIM)
    return (ws, bs, w_sk, b_sk, w_mo, b_mo, w_im, b_im)


def reference_forward_f32(x_nchw, params):
    """Pure-JAX full-f32 reference (loose tolerance vs. bf16 kernel)."""
    (ws, bs, w_sk, b_sk, w_mo, b_mo, w_im, b_im) = params
    x2d = x_nchw.reshape(x_nchw.shape[0], -1)
    shared = jnp.maximum(x2d @ ws + bs, 0.0)
    return (shared @ w_sk + b_sk, shared @ w_mo + b_mo, shared @ w_im + b_im)


def reference_forward_matched(x_nchw, params):
    """Pure-JAX reference with the same bf16 casts / f32 accumulation as the kernel."""
    (ws, bs, w_sk, b_sk, w_mo, b_mo, w_im, b_im) = params
    x2d = x_nchw.reshape(x_nchw.shape[0], -1).astype(jnp.bfloat16)
    shared = jnp.maximum(
        jnp.dot(x2d, ws.astype(jnp.bfloat16),
                preferred_element_type=jnp.float32) + bs, 0.0)
    sh_bf = shared.astype(jnp.bfloat16)

    def head(w, b_):
        return jnp.dot(sh_bf, w.astype(jnp.bfloat16),
                       preferred_element_type=jnp.float32) + b_

    return head(w_sk, b_sk), head(w_mo, b_mo), head(w_im, b_im)


if __name__ == "__main__":
    key = jax.random.PRNGKey(0)
    kx, kp = jax.random.split(key)
    x = jax.random.normal(kx, (B, C, H, W), jnp.float32)
    params = init_params(kp)
    fused_params = prepare_params(params)     # one-time, outside the call path

    fwd = jax.jit(multi_task_forward)
    sketch, motion, image = fwd(x, fused_params)
    jax.block_until_ready((sketch, motion, image))

    ref_m = reference_forward_matched(x, params)
    ref_f = reference_forward_f32(x, params)
    for out, rm, rf, dim in zip((sketch, motion, image), ref_m, ref_f,
                                (SKETCH_DIM, MOTION_DIM, IMAGE_DIM)):
        assert out.shape == (B, dim)
        # Tight check vs. the bf16-matched reference.
        assert jnp.allclose(out, rm, atol=5e-3, rtol=5e-3)
        # Loose sanity check vs. the full-f32 reference (bf16 weight quantization).
        assert jnp.allclose(out, rf, atol=5e-2, rtol=5e-2)

    print("KERNEL_OK")
</pallas_src>

<mosaic_0001>
module attributes {stable_mosaic.version = 11 : i64} {
  func.func @mtl_kernel(%arg0: i32, %arg1: memref<16x1024xf32, #tpu.memory_space<vmem>>, %arg2: memref<1024x128xbf16, #tpu.memory_space<vmem>>, %arg3: memref<1x128xf32, #tpu.memory_space<vmem>>, %arg4: memref<128x640xbf16, #tpu.memory_space<vmem>>, %arg5: memref<1x640xf32, #tpu.memory_space<vmem>>, %arg6: memref<16x256xf32, #tpu.memory_space<vmem>>, %arg7: memref<16x128xf32, #tpu.memory_space<vmem>>, %arg8: memref<16x256xf32, #tpu.memory_space<vmem>>) attributes {dimension_semantics = [#tpu.dimension_semantics<parallel>], iteration_bounds = array<i64: 1>, scalar_prefetch = 0 : i64, scratch_operands = 0 : i64, tpu.core_type = #tpu.core_type<tc>, window_params = [{transform_indices = @transform_0, window_bounds = array<i64: 16, 1024>}, {pipeline_mode = #tpu.pipeline_mode<synchronous>, transform_indices = @transform_1, window_bounds = array<i64: 1024, 128>}, {pipeline_mode = #tpu.pipeline_mode<synchronous>, transform_indices = @transform_2, window_bounds = array<i64: 1, 128>}, {pipeline_mode = #tpu.pipeline_mode<synchronous>, transform_indices = @transform_3, window_bounds = array<i64: 128, 640>}, {pipeline_mode = #tpu.pipeline_mode<synchronous>, transform_indices = @transform_4, window_bounds = array<i64: 1, 640>}, {transform_indices = @transform_5, window_bounds = array<i64: 16, 256>}, {transform_indices = @transform_6, window_bounds = array<i64: 16, 128>}, {transform_indices = @transform_7, window_bounds = array<i64: 16, 256>}]} {
    %c0 = arith.constant 0 : index
    %c0_0 = arith.constant 0 : index
    %0 = vector.load %arg1[%c0, %c0_0] : memref<16x1024xf32, #tpu.memory_space<vmem>>, vector<16x1024xf32>
    %1 = arith.truncf %0 : vector<16x1024xf32> to vector<16x1024xbf16>
    %c0_1 = arith.constant 0 : index
    %c0_2 = arith.constant 0 : index
    %2 = vector.load %arg2[%c0_1, %c0_2] : memref<1024x128xbf16, #tpu.memory_space<vmem>>, vector<1024x128xbf16>
    %cst = arith.constant dense<0.000000e+00> : vector<16x128xf32>
    %3 = tpu.matmul %1, %2, %cst {dimension_numbers = #tpu.dot_dimension_numbers<[1], [0], [0], [1], [0, 0, 1, 1], [], []>} : vector<16x1024xbf16>, vector<1024x128xbf16>, vector<16x128xf32> -> vector<16x128xf32>
    %c0_3 = arith.constant 0 : index
    %c0_4 = arith.constant 0 : index
    %4 = vector.load %arg3[%c0_3, %c0_4] : memref<1x128xf32, #tpu.memory_space<vmem>>, vector<1x128xf32>
    %5 = vector.broadcast %4 : vector<1x128xf32> to vector<16x128xf32>
    %6 = arith.addf %3, %5 : vector<16x128xf32>
    %cst_5 = arith.constant 0.000000e+00 : f32
    %7 = vector.broadcast %cst_5 : f32 to vector<16x128xf32>
    %8 = arith.maximumf %6, %7 : vector<16x128xf32>
    %9 = arith.truncf %8 : vector<16x128xf32> to vector<16x128xbf16>
    %c0_6 = arith.constant 0 : index
    %c0_7 = arith.constant 0 : index
    %10 = vector.load %arg4[%c0_6, %c0_7] : memref<128x640xbf16, #tpu.memory_space<vmem>>, vector<128x640xbf16>
    %cst_8 = arith.constant dense<0.000000e+00> : vector<16x640xf32>
    %11 = tpu.matmul %9, %10, %cst_8 {dimension_numbers = #tpu.dot_dimension_numbers<[1], [0], [0], [1], [0, 0, 1, 1], [], []>} : vector<16x128xbf16>, vector<128x640xbf16>, vector<16x640xf32> -> vector<16x640xf32>
    %c0_9 = arith.constant 0 : index
    %c0_10 = arith.constant 0 : index
    %12 = vector.load %arg5[%c0_9, %c0_10] : memref<1x640xf32, #tpu.memory_space<vmem>>, vector<1x640xf32>
    %13 = vector.broadcast %12 : vector<1x640xf32> to vector<16x640xf32>
    %14 = arith.addf %11, %13 : vector<16x640xf32>
    %15 = vector.extract_strided_slice %14 {offsets = [0, 0], sizes = [16, 256], strides = [1, 1]} : vector<16x640xf32> to vector<16x256xf32>
    %c0_11 = arith.constant 0 : index
    %c0_12 = arith.constant 0 : index
    %16 = vector.load %arg6[%c0_11, %c0_12] : memref<16x256xf32, #tpu.memory_space<vmem>>, vector<16x256xf32>
    tpu.vector_store %arg6[%c0_11, %c0_12], %15 {strides = array<i32>} : memref<16x256xf32, #tpu.memory_space<vmem>>, vector<16x256xf32>,
    %17 = vector.extract_strided_slice %14 {offsets = [0, 256], sizes = [16, 128], strides = [1, 1]} : vector<16x640xf32> to vector<16x128xf32>
    %c0_13 = arith.constant 0 : index
    %c0_14 = arith.constant 0 : index
    %18 = vector.load %arg7[%c0_13, %c0_14] : memref<16x128xf32, #tpu.memory_space<vmem>>, vector<16x128xf32>
    tpu.vector_store %arg7[%c0_13, %c0_14], %17 {strides = array<i32>} : memref<16x128xf32, #tpu.memory_space<vmem>>, vector<16x128xf32>,
    %19 = vector.extract_strided_slice %14 {offsets = [0, 384], sizes = [16, 256], strides = [1, 1]} : vector<16x640xf32> to vector<16x256xf32>
    %c0_15 = arith.constant 0 : index
    %c0_16 = arith.constant 0 : index
    %20 = vector.load %arg8[%c0_15, %c0_16] : memref<16x256xf32, #tpu.memory_space<vmem>>, vector<16x256xf32>
    tpu.vector_store %arg8[%c0_15, %c0_16], %19 {strides = array<i32>} : memref<16x256xf32, #tpu.memory_space<vmem>>, vector<16x256xf32>,
    return
  }
  func.func @transform_0(%arg0: i32) -> (i32, i32) {
    %c0_i32 = arith.constant 0 : i32
    %c0_i32_0 = arith.constant 0 : i32
    return %arg0, %c0_i32 : i32, i32
  }
  func.func @transform_1(%arg0: i32) -> (i32, i32) {
    %c0_i32 = arith.constant 0 : i32
    %c0_i32_0 = arith.constant 0 : i32
    %c0_i32_1 = arith.constant 0 : i32
    return %c0_i32, %c0_i32_0 : i32, i32
  }
  func.func @transform_2(%arg0: i32) -> (i32, i32) {
    %c0_i32 = arith.constant 0 : i32
    %c0_i32_0 = arith.constant 0 : i32
    %c0_i32_1 = arith.constant 0 : i32
    return %c0_i32, %c0_i32_0 : i32, i32
  }
  func.func @transform_3(%arg0: i32) -> (i32, i32) {
    %c0_i32 = arith.constant 0 : i32
    %c0_i32_0 = arith.constant 0 : i32
    %c0_i32_1 = arith.constant 0 : i32
    return %c0_i32, %c0_i32_0 : i32, i32
  }
  func.func @transform_4(%arg0: i32) -> (i32, i32) {
    %c0_i32 = arith.constant 0 : i32
    %c0_i32_0 = arith.constant 0 : i32
    %c0_i32_1 = arith.constant 0 : i32
    return %c0_i32, %c0_i32_0 : i32, i32
  }
  func.func @transform_5(%arg0: i32) -> (i32, i32) {
    %c0_i32 = arith.constant 0 : i32
    %c0_i32_0 = arith.constant 0 : i32
    return %arg0, %c0_i32 : i32, i32
  }
  func.func @transform_6(%arg0: i32) -> (i32, i32) {
    %c0_i32 = arith.constant 0 : i32
    %c0_i32_0 = arith.constant 0 : i32
    return %arg0, %c0_i32 : i32, i32
  }
  func.func @transform_7(%arg0: i32) -> (i32, i32) {
    %c0_i32 = arith.constant 0 : i32
    %c0_i32_0 = arith.constant 0 : i32
    return %arg0, %c0_i32 : i32, i32
  }
}

</mosaic_0001>

<llo_original>
// kernel: multi_task_forward.1
$region0: #{multi_task_forward.1}
  #allocation0 [shape = 'u32[]', space=smem, size = 0x4, offset = 0x4, fixed_abs, tag = 'smem constant byte address 0x4 - core index']
  #allocation1 [shape = 'u32[144,128]{1,0:T(1,128)}', space=vmem, size = 0x12000, scoped, tag = 'internal scratch']
  %s0 = inlined_call_operand.vmem [shape: f32[16,1024], index: 0, kind: input, shape index: {}]
  %s1 = inlined_call_operand.hbm [shape: bf16[1024,128], index: 1, kind: input, shape index: {}]
  %s2 = inlined_call_operand.vmem [shape: f32[1,128], index: 2, kind: input, shape index: {}]
  %s3 = inlined_call_operand.hbm [shape: bf16[128,640], index: 3, kind: input, shape index: {}]
  %s4 = inlined_call_operand.vmem [shape: f32[1,640], index: 4, kind: input, shape index: {}]
  %s5 = inlined_call_operand.vmem [shape: f32[16,256], index: 5, kind: output, shape index: {0}]
  %s6 = inlined_call_operand.vmem [shape: f32[16,128], index: 6, kind: output, shape index: {1}]
  %s7 = inlined_call_operand.vmem [shape: f32[16,256], index: 7, kind: output, shape index: {2}]
  %8 = xla_tuple %s5, %s6, %s7
  %s9 = sld [smem:[#allocation0]]
  $region54: #{multi_task_forward.1} parent=0
    _
  %s11 = ssub.s32 1, %s9
  %s12 = scalar_select 0, %s11, %s9
  $region1: #{multi_task_forward.1} parent=0
    #allocation2 [shape = 'u8[262144]{0}', space=vmem, size = 0x40000, scoped, tag = 'input window, operand 1, single buffered']
    #allocation3 [shape = 's32[1]{0}', space=sflag, size = 0x4, scoped, tag = 'scoped memory for multi_task_forward.1']
    #allocation4 [shape = 'u8[163840]{0}', space=vmem, size = 0x28000, scoped, tag = 'input window, operand 3, single buffered']
    #allocation5 [shape = 's32[1]{0}', space=sflag, size = 0x4, scoped, tag = 'scoped memory for multi_task_forward.1']
    %13 = vsyncpa [#allocation3], 0
    %14 = vsyncpa [#allocation5], 0
    // Predicated region
    $region2: #{multi_task_forward.1} parent=1 // pred_check
      _
    $region3: #{multi_task_forward.1} parent=1 // pred_check_branch
      %16 = sbr.rel (0) target = $region5
    $region4: #{multi_task_forward.1} parent=1 // pred_region
      _
    $region5: #{multi_task_forward.1} parent=1 // pred_fallthru
      _
    // Predicated region
    $region6: #{multi_task_forward.1} parent=1 // pred_check
      _
    $region7: #{multi_task_forward.1} parent=1 // pred_check_branch
      %18 = sbr.rel (0) target = $region9
    $region8: #{multi_task_forward.1} parent=1 // pred_region
      %s20 = ssub.s32 8192, 8192
      %21 = vsyncadd [#allocation3], %s20
      %s22 = sshll.u32 [#allocation2], 4
      %s23 = int_to_ptr.vmem [resolvable:$true] %s22
      %28 = dma.hbm_to_vmem [thread:$0]  %s1, 8192, %s23, [#allocation3], 64, 64, 4
    $region9: #{multi_task_forward.1} parent=1 // pred_fallthru
      _
    // Predicated region
    $region10: #{multi_task_forward.1} parent=1 // pred_check
      _
    $region11: #{multi_task_forward.1} parent=1 // pred_check_branch
      %30 = sbr.rel (0) target = $region13
    $region12: #{multi_task_forward.1} parent=1 // pred_region
      _
    $region13: #{multi_task_forward.1} parent=1 // pred_fallthru
      _
    // Predicated region
    $region14: #{multi_task_forward.1} parent=1 // pred_check
      _
    $region15: #{multi_task_forward.1} parent=1 // pred_check_branch
      %32 = sbr.rel (0) target = $region17
    $region16: #{multi_task_forward.1} parent=1 // pred_region
      %s34 = ssub.s32 5120, 5120
      %35 = vsyncadd [#allocation5], %s34
      %s36 = sshll.u32 [#allocation4], 4
      %s37 = int_to_ptr.vmem [resolvable:$true] %s36
      %42 = dma.hbm_to_vmem [thread:$0]  %s3, 5120, %s37, [#allocation5], 320, 320, 20
    $region17: #{multi_task_forward.1} parent=1 // pred_fallthru
      _
    // Predicated region
    $region18: #{multi_task_forward.1} parent=1 // pred_check
      _
    $region19: #{multi_task_forward.1} parent=1 // pred_check_branch
      %44 = sbr.rel (0) target = $region21
    $region20: #{multi_task_forward.1} parent=1 // pred_region
      _
    $region21: #{multi_task_forward.1} parent=1 // pred_fallthru
      _
    // Predicated region
    $region22: #{multi_task_forward.1} parent=1 // pred_check
      _
    $region23: #{multi_task_forward.1} parent=1 // pred_check_branch
      %46 = sbr.rel (0) target = $region25
    $region24: #{multi_task_forward.1} parent=1 // pred_region
      %47 = dma.done [#allocation3], 8192
    $region25: #{multi_task_forward.1} parent=1 // pred_fallthru
      _
    // Predicated region
    $region26: #{multi_task_forward.1} parent=1 // pred_check
      _
    $region27: #{multi_task_forward.1} parent=1 // pred_check_branch
      %49 = sbr.rel (0) target = $region29
    $region28: #{multi_task_forward.1} parent=1 // pred_region
      %50 = dma.done [#allocation5], 5120
    $region29: #{multi_task_forward.1} parent=1 // pred_fallthru
      _
    %v52 = vld [vmem:[%s0] sm:$0xff]
    %v53 = vld [vmem:[%s0 + $0x8] sm:$0xff]
    %v54 = vld [vmem:[%s0 + $0x10] sm:$0xff]
    %v55 = vld [vmem:[%s0 + $0x18] sm:$0xff]
    %v56 = vld [vmem:[%s0 + $0x20] sm:$0xff]
    %v57 = vld [vmem:[%s0 + $0x28] sm:$0xff]
    %v58 = vld [vmem:[%s0 + $0x30] sm:$0xff]
    %v59 = vld [vmem:[%s0 + $0x38] sm:$0xff]
    %v60 = vld [vmem:[%s0 + $0x40] sm:$0xff]
    %v61 = vld [vmem:[%s0 + $0x48] sm:$0xff]
    %v62 = vld [vmem:[%s0 + $0x50] sm:$0xff]
    %v63 = vld [vmem:[%s0 + $0x58] sm:$0xff]
    %v64 = vld [vmem:[%s0 + $0x60] sm:$0xff]
    %v65 = vld [vmem:[%s0 + $0x68] sm:$0xff]
    %v66 = vld [vmem:[%s0 + $0x70] sm:$0xff]
    %v67 = vld [vmem:[%s0 + $0x78] sm:$0xff]
    %v68 = vpack.c.bf16 %v60, %v52
    %v69 = vpack.c.bf16 %v61, %v53
    %v70 = vpack.c.bf16 %v62, %v54
    %v71 = vpack.c.bf16 %v63, %v55
    %v72 = vpack.c.bf16 %v64, %v56
    %v73 = vpack.c.bf16 %v65, %v57
    %v74 = vpack.c.bf16 %v66, %v58
    %v75 = vpack.c.bf16 %v67, %v59
    %v76 = vld [vmem:[#allocation2] sm:$0xf]
    %v77 = vld [vmem:[#allocation2 + $0x4] sm:$0xf]
    %v78 = vld [vmem:[#allocation2 + $0x8] sm:$0xf]
    %v79 = vld [vmem:[#allocation2 + $0xc] sm:$0xf]
    %v80 = vld [vmem:[#allocation2 + $0x10] sm:$0xf]
    %v81 = vld [vmem:[#allocation2 + $0x14] sm:$0xf]
    %v82 = vld [vmem:[#allocation2 + $0x18] sm:$0xf]
    %v83 = vld [vmem:[#allocation2 + $0x1c] sm:$0xf]
    %v84 = vld [vmem:[#allocation2 + $0x20] sm:$0xf]
    %v85 = vld [vmem:[#allocation2 + $0x24] sm:$0xf]
    %v86 = vld [vmem:[#allocation2 + $0x28] sm:$0xf]
    %v87 = vld [vmem:[#allocation2 + $0x2c] sm:$0xf]
    %v88 = vld [vmem:[#allocation2 + $0x30] sm:$0xf]
    %v89 = vld [vmem:[#allocation2 + $0x34] sm:$0xf]
    %v90 = vld [vmem:[#allocation2 + $0x38] sm:$0xf]
    %v91 = vld [vmem:[#allocation2 + $0x3c] sm:$0xf]
    %v92 = vld [vmem:[#allocation2 + $0x40] sm:$0xf]
    %v93 = vld [vmem:[#allocation2 + $0x44] sm:$0xf]
    %v94 = vld [vmem:[#allocation2 + $0x48] sm:$0xf]
    %v95 = vld [vmem:[#allocation2 + $0x4c] sm:$0xf]
    %v96 = vld [vmem:[#allocation2 + $0x50] sm:$0xf]
    %v97 = vld [vmem:[#allocation2 + $0x54] sm:$0xf]
    %v98 = vld [vmem:[#allocation2 + $0x58] sm:$0xf]
    %v99 = vld [vmem:[#allocation2 + $0x5c] sm:$0xf]
    %v100 = vld [vmem:[#allocation2 + $0x60] sm:$0xf]
    %v101 = vld [vmem:[#allocation2 + $0x64] sm:$0xf]
    %v102 = vld [vmem:[#allocation2 + $0x68] sm:$0xf]
    %v103 = vld [vmem:[#allocation2 + $0x6c] sm:$0xf]
    %v104 = vld [vmem:[#allocation2 + $0x70] sm:$0xf]
    %v105 = vld [vmem:[#allocation2 + $0x74] sm:$0xf]
    %v106 = vld [vmem:[#allocation2 + $0x78] sm:$0xf]
    %v107 = vld [vmem:[#allocation2 + $0x7c] sm:$0xf]
    %v108 = vld [vmem:[#allocation2 + $0x80] sm:$0xf]
    %v109 = vld [vmem:[#allocation2 + $0x84] sm:$0xf]
    %v110 = vld [vmem:[#allocation2 + $0x88] sm:$0xf]
    %v111 = vld [vmem:[#allocation2 + $0x8c] sm:$0xf]
    %v112 = vld [vmem:[#allocation2 + $0x90] sm:$0xf]
    %v113 = vld [vmem:[#allocation2 + $0x94] sm:$0xf]
    %v114 = vld [vmem:[#allocation2 + $0x98] sm:$0xf]
    %v115 = vld [vmem:[#allocation2 + $0x9c] sm:$0xf]
    %v116 = vld [vmem:[#allocation2 + $0xa0] sm:$0xf]
    %v117 = vld [vmem:[#allocation2 + $0xa4] sm:$0xf]
    %v118 = vld [vmem:[#allocation2 + $0xa8] sm:$0xf]
    %v119 = vld [vmem:[#allocation2 + $0xac] sm:$0xf]
    %v120 = vld [vmem:[#allocation2 + $0xb0] sm:$0xf]
    %v121 = vld [vmem:[#allocation2 + $0xb4] sm:$0xf]
    %v122 = vld [vmem:[#allocation2 + $0xb8] sm:$0xf]
    %v123 = vld [vmem:[#allocation2 + $0xbc] sm:$0xf]
    %v124 = vld [vmem:[#allocation2 + $0xc0] sm:$0xf]
    %v125 = vld [vmem:[#allocation2 + $0xc4] sm:$0xf]
    %v126 = vld [vmem:[#allocation2 + $0xc8] sm:$0xf]
    %v127 = vld [vmem:[#allocation2 + $0xcc] sm:$0xf]
    %v128 = vld [vmem:[#allocation2 + $0xd0] sm:$0xf]
    %v129 = vld [vmem:[#allocation2 + $0xd4] sm:$0xf]
    %v130 = vld [vmem:[#allocation2 + $0xd8] sm:$0xf]
    %v131 = vld [vmem:[#allocation2 + $0xdc] sm:$0xf]
    %v132 = vld [vmem:[#allocation2 + $0xe0] sm:$0xf]
    %v133 = vld [vmem:[#allocation2 + $0xe4] sm:$0xf]
    %v134 = vld [vmem:[#allocation2 + $0xe8] sm:$0xf]
    %v135 = vld [vmem:[#allocation2 + $0xec] sm:$0xf]
    %v136 = vld [vmem:[#allocation2 + $0xf0] sm:$0xf]
    %v137 = vld [vmem:[#allocation2 + $0xf4] sm:$0xf]
    %v138 = vld [vmem:[#allocation2 + $0xf8] sm:$0xf]
    %v139 = vld [vmem:[#allocation2 + $0xfc] sm:$0xf]
    %v140 = vld [vmem:[#allocation2 + $0x100] sm:$0xf]
    %v141 = vld [vmem:[#allocation2 + $0x104] sm:$0xf]
    %v142 = vld [vmem:[#allocation2 + $0x108] sm:$0xf]
    %v143 = vld [vmem:[#allocation2 + $0x10c] sm:$0xf]
    %v144 = vld [vmem:[#allocation2 + $0x110] sm:$0xf]
    %v145 = vld [vmem:[#allocation2 + $0x114] sm:$0xf]
    %v146 = vld [vmem:[#allocation2 + $0x118] sm:$0xf]
    %v147 = vld [vmem:[#allocation2 + $0x11c] sm:$0xf]
    %v148 = vld [vmem:[#allocation2 + $0x120] sm:$0xf]
    %v149 = vld [vmem:[#allocation2 + $0x124] sm:$0xf]
    %v150 = vld [vmem:[#allocation2 + $0x128] sm:$0xf]
    %v151 = vld [vmem:[#allocation2 + $0x12c] sm:$0xf]
    %v152 = vld [vmem:[#allocation2 + $0x130] sm:$0xf]
    %v153 = vld [vmem:[#allocation2 + $0x134] sm:$0xf]
    %v154 = vld [vmem:[#allocation2 + $0x138] sm:$0xf]
    %v155 = vld [vmem:[#allocation2 + $0x13c] sm:$0xf]
    %v156 = vld [vmem:[#allocation2 + $0x140] sm:$0xf]
    %v157 = vld [vmem:[#allocation2 + $0x144] sm:$0xf]
    %v158 = vld [vmem:[#allocation2 + $0x148] sm:$0xf]
    %v159 = vld [vmem:[#allocation2 + $0x14c] sm:$0xf]
    %v160 = vld [vmem:[#allocation2 + $0x150] sm:$0xf]
    %v161 = vld [vmem:[#allocation2 + $0x154] sm:$0xf]
    %v162 = vld [vmem:[#allocation2 + $0x158] sm:$0xf]
    %v163 = vld [vmem:[#allocation2 + $0x15c] sm:$0xf]
    %v164 = vld [vmem:[#allocation2 + $0x160] sm:$0xf]
    %v165 = vld [vmem:[#allocation2 + $0x164] sm:$0xf]
    %v166 = vld [vmem:[#allocation2 + $0x168] sm:$0xf]
    %v167 = vld [vmem:[#allocation2 + $0x16c] sm:$0xf]
    %v168 = vld [vmem:[#allocation2 + $0x170] sm:$0xf]
    %v169 = vld [vmem:[#allocation2 + $0x174] sm:$0xf]
    %v170 = vld [vmem:[#allocation2 + $0x178] sm:$0xf]
    %v171 = vld [vmem:[#allocation2 + $0x17c] sm:$0xf]
    %v172 = vld [vmem:[#allocation2 + $0x180] sm:$0xf]
    %v173 = vld [vmem:[#allocation2 + $0x184] sm:$0xf]
    %v174 = vld [vmem:[#allocation2 + $0x188] sm:$0xf]
    %v175 = vld [vmem:[#allocation2 + $0x18c] sm:$0xf]
    %v176 = vld [vmem:[#allocation2 + $0x190] sm:$0xf]
    %v177 = vld [vmem:[#allocation2 + $0x194] sm:$0xf]
    %v178 = vld [vmem:[#allocation2 + $0x198] sm:$0xf]
    %v179 = vld [vmem:[#allocation2 + $0x19c] sm:$0xf]
    %v180 = vld [vmem:[#allocation2 + $0x1a0] sm:$0xf]
    %v181 = vld [vmem:[#allocation2 + $0x1a4] sm:$0xf]
    %v182 = vld [vmem:[#allocation2 + $0x1a8] sm:$0xf]
    %v183 = vld [vmem:[#allocation2 + $0x1ac] sm:$0xf]
    %v184 = vld [vmem:[#allocation2 + $0x1b0] sm:$0xf]
    %v185 = vld [vmem:[#allocation2 + $0x1b4] sm:$0xf]
    %v186 = vld [vmem:[#allocation2 + $0x1b8] sm:$0xf]
    %v187 = vld [vmem:[#allocation2 + $0x1bc] sm:$0xf]
    %v188 = vld [vmem:[#allocation2 + $0x1c0] sm:$0xf]
    %v189 = vld [vmem:[#allocation2 + $0x1c4] sm:$0xf]
    %v190 = vld [vmem:[#allocation2 + $0x1c8] sm:$0xf]
    %v191 = vld [vmem:[#allocation2 + $0x1cc] sm:$0xf]
    %v192 = vld [vmem:[#allocation2 + $0x1d0] sm:$0xf]
    %v193 = vld [vmem:[#allocation2 + $0x1d4] sm:$0xf]
    %v194 = vld [vmem:[#allocation2 + $0x1d8] sm:$0xf]
    %v195 = vld [vmem:[#allocation2 + $0x1dc] sm:$0xf]
    %v196 = vld [vmem:[#allocation2 + $0x1e0] sm:$0xf]
    %v197 = vld [vmem:[#allocation2 + $0x1e4] sm:$0xf]
    %v198 = vld [vmem:[#allocation2 + $0x1e8] sm:$0xf]
    %v199 = vld [vmem:[#allocation2 + $0x1ec] sm:$0xf]
    %v200 = vld [vmem:[#allocation2 + $0x1f0] sm:$0xf]
    %v201 = vld [vmem:[#allocation2 + $0x1f4] sm:$0xf]
    %v202 = vld [vmem:[#allocation2 + $0x1f8] sm:$0xf]
    %v203 = vld [vmem:[#allocation2 + $0x1fc] sm:$0xf]
    %v204 = vld [vmem:[%s2] sm:$0x1]
    %v206 = vlaneseq
    %v207 = vshrl.u32 %v206, 7
    %v208 = vsub.s32 0, %v207
    %v209 = vrot.slane %v204, %v208
    %v339 = vunpack.c.l.b16 %v76
    %v340 = vunpack.c.l.b16 %v77
    %v341 = vunpack.c.l.b16 %v78
    %v342 = vunpack.c.l.b16 %v79
    %v343 = vunpack.c.l.b16 %v80
    %v344 = vunpack.c.l.b16 %v81
    %v345 = vunpack.c.l.b16 %v82
    %v346 = vunpack.c.l.b16 %v83
    %v347 = vunpack.c.l.b16 %v84
    %v348 = vunpack.c.l.b16 %v85
    %v349 = vunpack.c.l.b16 %v86
    %v350 = vunpack.c.l.b16 %v87
    %v351 = vunpack.c.l.b16 %v88
    %v352 = vunpack.c.l.b16 %v89
    %v353 = vunpack.c.l.b16 %v90
    %v354 = vunpack.c.l.b16 %v91
    %v355 = vunpack.c.l.b16 %v92
    %v356 = vunpack.c.l.b16 %v93
    %v357 = vunpack.c.l.b16 %v94
    %v358 = vunpack.c.l.b16 %v95
    %v359 = vunpack.c.l.b16 %v96
    %v360 = vunpack.c.l.b16 %v97
    %v361 = vunpack.c.l.b16 %v98
    %v362 = vunpack.c.l.b16 %v99
    %v363 = vunpack.c.l.b16 %v100
    %v364 = vunpack.c.l.b16 %v101
    %v365 = vunpack.c.l.b16 %v102
    %v366 = vunpack.c.l.b16 %v103
    %v367 = vunpack.c.l.b16 %v104
    %v368 = vunpack.c.l.b16 %v105
    %v369 = vunpack.c.l.b16 %v106
    %v370 = vunpack.c.l.b16 %v107
    %v371 = vunpack.c.l.b16 %v108
    %v372 = vunpack.c.l.b16 %v109
    %v373 = vunpack.c.l.b16 %v110
    %v374 = vunpack.c.l.b16 %v111
    %v375 = vunpack.c.l.b16 %v112
    %v376 = vunpack.c.l.b16 %v113
    %v377 = vunpack.c.l.b16 %v114
    %v378 = vunpack.c.l.b16 %v115
    %v379 = vunpack.c.l.b16 %v116
    %v380 = vunpack.c.l.b16 %v117
    %v381 = vunpack.c.l.b16 %v118
    %v382 = vunpack.c.l.b16 %v119
    %v383 = vunpack.c.l.b16 %v120
    %v384 = vunpack.c.l.b16 %v121
    %v385 = vunpack.c.l.b16 %v122
    %v386 = vunpack.c.l.b16 %v123
    %v387 = vunpack.c.l.b16 %v124
    %v388 = vunpack.c.l.b16 %v125
    %v389 = vunpack.c.l.b16 %v126
    %v390 = vunpack.c.l.b16 %v127
    %v391 = vunpack.c.l.b16 %v128
    %v392 = vunpack.c.l.b16 %v129
    %v393 = vunpack.c.l.b16 %v130
    %v394 = vunpack.c.l.b16 %v131
    %v395 = vunpack.c.l.b16 %v132
    %v396 = vunpack.c.l.b16 %v133
    %v397 = vunpack.c.l.b16 %v134
    %v398 = vunpack.c.l.b16 %v135
    %v399 = vunpack.c.l.b16 %v136
    %v400 = vunpack.c.l.b16 %v137
    %v401 = vunpack.c.l.b16 %v138
    %v402 = vunpack.c.l.b16 %v139
    %v403 = vunpack.c.l.b16 %v140
    %v404 = vunpack.c.l.b16 %v141
    %v405 = vunpack.c.l.b16 %v142
    %v406 = vunpack.c.l.b16 %v143
    %v407 = vunpack.c.l.b16 %v144
    %v408 = vunpack.c.l.b16 %v145
    %v409 = vunpack.c.l.b16 %v146
    %v410 = vunpack.c.l.b16 %v147
    %v411 = vunpack.c.l.b16 %v148
    %v412 = vunpack.c.l.b16 %v149
    %v413 = vunpack.c.l.b16 %v150
    %v414 = vunpack.c.l.b16 %v151
    %v415 = vunpack.c.l.b16 %v152
    %v416 = vunpack.c.l.b16 %v153
    %v417 = vunpack.c.l.b16 %v154
    %v418 = vunpack.c.l.b16 %v155
    %v419 = vunpack.c.l.b16 %v156
    %v420 = vunpack.c.l.b16 %v157
    %v421 = vunpack.c.l.b16 %v158
    %v422 = vunpack.c.l.b16 %v159
    %v423 = vunpack.c.l.b16 %v160
    %v424 = vunpack.c.l.b16 %v161
    %v425 = vunpack.c.l.b16 %v162
    %v426 = vunpack.c.l.b16 %v163
    %v427 = vunpack.c.l.b16 %v164
    %v428 = vunpack.c.l.b16 %v165
    %v429 = vunpack.c.l.b16 %v166
    %v430 = vunpack.c.l.b16 %v167
    %v431 = vunpack.c.l.b16 %v168
    %v432 = vunpack.c.l.b16 %v169
    %v433 = vunpack.c.l.b16 %v170
    %v434 = vunpack.c.l.b16 %v171
    %v435 = vunpack.c.l.b16 %v172
    %v436 = vunpack.c.l.b16 %v173
    %v437 = vunpack.c.l.b16 %v174
    %v438 = vunpack.c.l.b16 %v175
    %v439 = vunpack.c.l.b16 %v176
    %v440 = vunpack.c.l.b16 %v177
    %v441 = vunpack.c.l.b16 %v178
    %v442 = vunpack.c.l.b16 %v179
    %v443 = vunpack.c.l.b16 %v180
    %v444 = vunpack.c.l.b16 %v181
    %v445 = vunpack.c.l.b16 %v182
    %v446 = vunpack.c.l.b16 %v183
    %v447 = vunpack.c.l.b16 %v184
    %v448 = vunpack.c.l.b16 %v185
    %v449 = vunpack.c.l.b16 %v186
    %v450 = vunpack.c.l.b16 %v187
    %v451 = vunpack.c.l.b16 %v188
    %v452 = vunpack.c.l.b16 %v189
    %v453 = vunpack.c.l.b16 %v190
    %v454 = vunpack.c.l.b16 %v191
    %v455 = vunpack.c.l.b16 %v192
    %v456 = vunpack.c.l.b16 %v193
    %v457 = vunpack.c.l.b16 %v194
    %v458 = vunpack.c.l.b16 %v195
    %v459 = vunpack.c.l.b16 %v196
    %v460 = vunpack.c.l.b16 %v197
    %v461 = vunpack.c.l.b16 %v198
    %v462 = vunpack.c.l.b16 %v199
    %v463 = vunpack.c.l.b16 %v200
    %v464 = vunpack.c.l.b16 %v201
    %v465 = vunpack.c.l.b16 %v202
    %v466 = vunpack.c.l.b16 %v203
    %v467 = vpack.c.b16 %v340, %v339
    %v468 = vpack.c.b16 %v342, %v341
    %v469 = vpack.c.b16 %v344, %v343
    %v470 = vpack.c.b16 %v346, %v345
    %v471 = vpack.c.b16 %v348, %v347
    %v472 = vpack.c.b16 %v350, %v349
    %v473 = vpack.c.b16 %v352, %v351
    %v474 = vpack.c.b16 %v354, %v353
    %v475 = vpack.c.b16 %v356, %v355
    %v476 = vpack.c.b16 %v358, %v357
    %v477 = vpack.c.b16 %v360, %v359
    %v478 = vpack.c.b16 %v362, %v361
    %v479 = vpack.c.b16 %v364, %v363
    %v480 = vpack.c.b16 %v366, %v365
    %v481 = vpack.c.b16 %v368, %v367
    %v482 = vpack.c.b16 %v370, %v369
    %v483 = vpack.c.b16 %v372, %v371
    %v484 = vpack.c.b16 %v374, %v373
    %v485 = vpack.c.b16 %v376, %v375
    %v486 = vpack.c.b16 %v378, %v377
    %v487 = vpack.c.b16 %v380, %v379
    %v488 = vpack.c.b16 %v382, %v381
    %v489 = vpack.c.b16 %v384, %v383
    %v490 = vpack.c.b16 %v386, %v385
    %v491 = vpack.c.b16 %v388, %v387
    %v492 = vpack.c.b16 %v390, %v389
    %v493 = vpack.c.b16 %v392, %v391
    %v494 = vpack.c.b16 %v394, %v393
    %v495 = vpack.c.b16 %v396, %v395
    %v496 = vpack.c.b16 %v398, %v397
    %v497 = vpack.c.b16 %v400, %v399
    %v498 = vpack.c.b16 %v402, %v401
    %v499 = vpack.c.b16 %v404, %v403
    %v500 = vpack.c.b16 %v406, %v405
    %v501 = vpack.c.b16 %v408, %v407
    %v502 = vpack.c.b16 %v410, %v409
    %v503 = vpack.c.b16 %v412, %v411
    %v504 = vpack.c.b16 %v414, %v413
    %v505 = vpack.c.b16 %v416, %v415
    %v506 = vpack.c.b16 %v418, %v417
    %v507 = vpack.c.b16 %v420, %v419
    %v508 = vpack.c.b16 %v422, %v421
    %v509 = vpack.c.b16 %v424, %v423
    %v510 = vpack.c.b16 %v426, %v425
    %v511 = vpack.c.b16 %v428, %v427
    %v512 = vpack.c.b16 %v430, %v429
    %v513 = vpack.c.b16 %v432, %v431
    %v514 = vpack.c.b16 %v434, %v433
    %v515 = vpack.c.b16 %v436, %v435
    %v516 = vpack.c.b16 %v438, %v437
    %v517 = vpack.c.b16 %v440, %v439
    %v518 = vpack.c.b16 %v442, %v441
    %v519 = vpack.c.b16 %v444, %v443
    %v520 = vpack.c.b16 %v446, %v445
    %v521 = vpack.c.b16 %v448, %v447
    %v522 = vpack.c.b16 %v450, %v449
    %v523 = vpack.c.b16 %v452, %v451
    %v524 = vpack.c.b16 %v454, %v453
    %v525 = vpack.c.b16 %v456, %v455
    %v526 = vpack.c.b16 %v458, %v457
    %v527 = vpack.c.b16 %v460, %v459
    %v528 = vpack.c.b16 %v462, %v461
    %v529 = vpack.c.b16 %v464, %v463
    %v530 = vpack.c.b16 %v466, %v465
    %595 = vmatprep.subr.bf16.mxu0 0
    %596 = vmatpush1.bf16.msra.mxu0 %v474
    %597 = vmatprep.subr.bf16.mxu0 0
    %598 = vmatpush1.bf16.msra.mxu0 %v473
    %599 = vmatprep.subr.bf16.mxu0 0
    %600 = vmatpush1.bf16.msra.mxu0 %v472
    %601 = vmatprep.subr.bf16.mxu0 0
    %602 = vmatpush1.bf16.msra.mxu0 %v471
    %603 = vmatprep.subr.bf16.mxu0 0
    %604 = vmatpush1.bf16.msra.mxu0 %v470
    %605 = vmatprep.subr.bf16.mxu0 0
    %606 = vmatpush1.bf16.msra.mxu0 %v469
    %607 = vmatprep.subr.bf16.mxu0 0
    %608 = vmatpush1.bf16.msra.mxu0 %v468
    %609 = vmatprep.subr.bf16.mxu0 0
    %610 = vmatpush1.bf16.msra.mxu0 %v467
    %611 = vmatprep.subr.bf16.mxu0 0
    %612 = vmatpush2.bf16.msra.mxu0 %v482
    %613 = vmatprep.subr.bf16.mxu0 0
    %614 = vmatpush2.bf16.msra.mxu0 %v481
    %615 = vmatprep.subr.bf16.mxu0 0
    %616 = vmatpush2.bf16.msra.mxu0 %v480
    %617 = vmatprep.subr.bf16.mxu0 0
    %618 = vmatpush2.bf16.msra.mxu0 %v479
    %619 = vmatprep.subr.bf16.mxu0 0
    %620 = vmatpush2.bf16.msra.mxu0 %v478
    %621 = vmatprep.subr.bf16.mxu0 0
    %622 = vmatpush2.bf16.msra.mxu0 %v477
    %623 = vmatprep.subr.bf16.mxu0 0
    %624 = vmatpush2.bf16.msra.mxu0 %v476
    %625 = vmatprep.subr.bf16.mxu0 0
    %626 = vmatpush2.bf16.msra.mxu0 %v475
    %627 = vmatprep.mubr.bf16.mxu0 %v69
    %628 = vmatmul.mubr.bf16.gmra.mxu0 %v68
    %v629 = vpop.f32.mrf.mxu0
    %v630 = vadd.f32 %v209, %v629
    %v631 = vpop.f32.mrf.mxu0
    %v632 = vpop.f32.mrf.mxu0
    %v633 = vadd.f32 %v209, %v632
    %v634 = vpop.f32.mrf.mxu0
    %635 = vdwg.mxu0
    %636 = vmatprep.subr.bf16.mxu0 0
    %637 = vmatpush1.bf16.msra.mxu0 %v490
    %638 = vmatprep.subr.bf16.mxu0 0
    %639 = vmatpush1.bf16.msra.mxu0 %v489
    %640 = vmatprep.subr.bf16.mxu0 0
    %641 = vmatpush1.bf16.msra.mxu0 %v488
    %642 = vmatprep.subr.bf16.mxu0 0
    %643 = vmatpush1.bf16.msra.mxu0 %v487
    %644 = vmatprep.subr.bf16.mxu0 0
    %645 = vmatpush1.bf16.msra.mxu0 %v486
    %646 = vmatprep.subr.bf16.mxu0 0
    %647 = vmatpush1.bf16.msra.mxu0 %v485
    %648 = vmatprep.subr.bf16.mxu0 0
    %649 = vmatpush1.bf16.msra.mxu0 %v484
    %650 = vmatprep.subr.bf16.mxu0 0
    %651 = vmatpush1.bf16.msra.mxu0 %v483
    %652 = vmatprep.subr.bf16.mxu0 0
    %653 = vmatpush2.bf16.msra.mxu0 %v498
    %654 = vmatprep.subr.bf16.mxu0 0
    %655 = vmatpush2.bf16.msra.mxu0 %v497
    %656 = vmatprep.subr.bf16.mxu0 0
    %657 = vmatpush2.bf16.msra.mxu0 %v496
    %658 = vmatprep.subr.bf16.mxu0 0
    %659 = vmatpush2.bf16.msra.mxu0 %v495
    %660 = vmatprep.subr.bf16.mxu0 0
    %661 = vmatpush2.bf16.msra.mxu0 %v494
    %662 = vmatprep.subr.bf16.mxu0 0
    %663 = vmatpush2.bf16.msra.mxu0 %v493
    %664 = vmatprep.subr.bf16.mxu0 0
    %665 = vmatpush2.bf16.msra.mxu0 %v492
    %666 = vmatprep.subr.bf16.mxu0 0
    %667 = vmatpush2.bf16.msra.mxu0 %v491
    %668 = vmatprep.mubr.bf16.mxu0 %v71
    %669 = vmatmul.mubr.bf16.gmra.mxu0 %v70
    %v670 = vpop.f32.mrf.mxu0
    %v671 = vadd.f32 %v630, %v670
    %v672 = vpop.f32.mrf.mxu0
    %v673 = vpop.f32.mrf.mxu0
    %v674 = vadd.f32 %v633, %v673
    %v675 = vpop.f32.mrf.mxu0
    %676 = vdwg.mxu0
    %677 = vmatprep.subr.bf16.mxu0 0
    %678 = vmatpush1.bf16.msra.mxu0 %v506
    %679 = vmatprep.subr.bf16.mxu0 0
    %680 = vmatpush1.bf16.msra.mxu0 %v505
    %681 = vmatprep.subr.bf16.mxu0 0
    %682 = vmatpush1.bf16.msra.mxu0 %v504
    %683 = vmatprep.subr.bf16.mxu0 0
    %684 = vmatpush1.bf16.msra.mxu0 %v503
    %685 = vmatprep.subr.bf16.mxu0 0
    %686 = vmatpush1.bf16.msra.mxu0 %v502
    %687 = vmatprep.subr.bf16.mxu0 0
    %688 = vmatpush1.bf16.msra.mxu0 %v501
    %689 = vmatprep.subr.bf16.mxu0 0
    %690 = vmatpush1.bf16.msra.mxu0 %v500
    %691 = vmatprep.subr.bf16.mxu0 0
    %692 = vmatpush1.bf16.msra.mxu0 %v499
    %693 = vmatprep.subr.bf16.mxu0 0
    %694 = vmatpush2.bf16.msra.mxu0 %v514
    %695 = vmatprep.subr.bf16.mxu0 0
    %696 = vmatpush2.bf16.msra.mxu0 %v513
    %697 = vmatprep.subr.bf16.mxu0 0
    %698 = vmatpush2.bf16.msra.mxu0 %v512
    %699 = vmatprep.subr.bf16.mxu0 0
    %700 = vmatpush2.bf16.msra.mxu0 %v511
    %701 = vmatprep.subr.bf16.mxu0 0
    %702 = vmatpush2.bf16.msra.mxu0 %v510
    %703 = vmatprep.subr.bf16.mxu0 0
    %704 = vmatpush2.bf16.msra.mxu0 %v509
    %705 = vmatprep.subr.bf16.mxu0 0
    %706 = vmatpush2.bf16.msra.mxu0 %v508
    %707 = vmatprep.subr.bf16.mxu0 0
    %708 = vmatpush2.bf16.msra.mxu0 %v507
    %709 = vmatprep.mubr.bf16.mxu0 %v73
    %710 = vmatmul.mubr.bf16.gmra.mxu0 %v72
    %v711 = vpop.f32.mrf.mxu0
    %v712 = vadd.f32 %v671, %v711
    %v713 = vpop.f32.mrf.mxu0
    %v714 = vpop.f32.mrf.mxu0
    %v715 = vadd.f32 %v674, %v714
    %v716 = vpop.f32.mrf.mxu0
    %717 = vdwg.mxu0
    %718 = vmatprep.subr.bf16.mxu0 0
    %719 = vmatpush1.bf16.msra.mxu0 %v522
    %720 = vmatprep.subr.bf16.mxu0 0
    %721 = vmatpush1.bf16.msra.mxu0 %v521
    %722 = vmatprep.subr.bf16.mxu0 0
    %723 = vmatpush1.bf16.msra.mxu0 %v520
    %724 = vmatprep.subr.bf16.mxu0 0
    %725 = vmatpush1.bf16.msra.mxu0 %v519
    %726 = vmatprep.subr.bf16.mxu0 0
    %727 = vmatpush1.bf16.msra.mxu0 %v518
    %728 = vmatprep.subr.bf16.mxu0 0
    %729 = vmatpush1.bf16.msra.mxu0 %v517
    %730 = vmatprep.subr.bf16.mxu0 0
    %731 = vmatpush1.bf16.msra.mxu0 %v516
    %732 = vmatprep.subr.bf16.mxu0 0
    %733 = vmatpush1.bf16.msra.mxu0 %v515
    %734 = vmatprep.subr.bf16.mxu0 0
    %735 = vmatpush2.bf16.msra.mxu0 %v530
    %736 = vmatprep.subr.bf16.mxu0 0
    %737 = vmatpush2.bf16.msra.mxu0 %v529
    %738 = vmatprep.subr.bf16.mxu0 0
    %739 = vmatpush2.bf16.msra.mxu0 %v528
    %740 = vmatprep.subr.bf16.mxu0 0
    %741 = vmatpush2.bf16.msra.mxu0 %v527
    %742 = vmatprep.subr.bf16.mxu0 0
    %743 = vmatpush2.bf16.msra.mxu0 %v526
    %744 = vmatprep.subr.bf16.mxu0 0
    %745 = vmatpush2.bf16.msra.mxu0 %v525
    %746 = vmatprep.subr.bf16.mxu0 0
    %747 = vmatpush2.bf16.msra.mxu0 %v524
    %748 = vmatprep.subr.bf16.mxu0 0
    %749 = vmatpush2.bf16.msra.mxu0 %v523
    %750 = vmatprep.mubr.bf16.mxu0 %v75
    %751 = vmatmul.mubr.bf16.gmra.mxu0 %v74
    %v752 = vpop.f32.mrf.mxu0
    %v753 = vadd.f32 %v712, %v752
    %v754 = vpop.f32.mrf.mxu0
    %v755 = vpop.f32.mrf.mxu0
    %v756 = vadd.f32 %v715, %v755
    %v757 = vpop.f32.mrf.mxu0
    %758 = vdwg.mxu0
    %v759 = vmax.f32 %v753, 0.0
    %v760 = vmax.f32 %v756, 0.0
    %v761 = vpack.c.bf16 %v760, %v759
    %v762 = vld [vmem:[#allocation4] sm:$0xff]
    %v763 = vld [vmem:[#allocation4 + $0x8] sm:$0xff]
    %v764 = vld [vmem:[#allocation4 + $0x10] sm:$0xf]
    %v765 = vld [vmem:[#allocation4 + $0x14] sm:$0xff]
    %v766 = vld [vmem:[#allocation4 + $0x1c] sm:$0xff]
    %v767 = vld [vmem:[#allocation4 + $0x24] sm:$0xf]
    %v768 = vld [vmem:[#allocation4 + $0x28] sm:$0xff]
    %v769 = vld [vmem:[#allocation4 + $0x30] sm:$0xff]
    %v770 = vld [vmem:[#allocation4 + $0x38] sm:$0xf]
    %v771 = vld [vmem:[#allocation4 + $0x3c] sm:$0xff]
    %v772 = vld [vmem:[#allocation4 + $0x44] sm:$0xff]
    %v773 = vld [vmem:[#allocation4 + $0x4c] sm:$0xf]
    %v774 = vld [vmem:[#allocation4 + $0x50] sm:$0xff]
    %v775 = vld [vmem:[#allocation4 + $0x58] sm:$0xff]
    %v776 = vld [vmem:[#allocation4 + $0x60] sm:$0xf]
    %v777 = vld [vmem:[#allocation4 + $0x64] sm:$0xff]
    %v778 = vld [vmem:[#allocation4 + $0x6c] sm:$0xff]
    %v779 = vld [vmem:[#allocation4 + $0x74] sm:$0xf]
    %v780 = vld [vmem:[#allocation4 + $0x78] sm:$0xff]
    %v781 = vld [vmem:[#allocation4 + $0x80] sm:$0xff]
    %v782 = vld [vmem:[#allocation4 + $0x88] sm:$0xf]
    %v783 = vld [vmem:[#allocation4 + $0x8c] sm:$0xff]
    %v784 = vld [vmem:[#allocation4 + $0x94] sm:$0xff]
    %v785 = vld [vmem:[#allocation4 + $0x9c] sm:$0xf]
    %v786 = vld [vmem:[#allocation4 + $0xa0] sm:$0xff]
    %v787 = vld [vmem:[#allocation4 + $0xa8] sm:$0xff]
    %v788 = vld [vmem:[#allocation4 + $0xb0] sm:$0xf]
    %v789 = vld [vmem:[#allocation4 + $0xb4] sm:$0xff]
    %v790 = vld [vmem:[#allocation4 + $0xbc] sm:$0xff]
    %v791 = vld [vmem:[#allocation4 + $0xc4] sm:$0xf]
    %v792 = vld [vmem:[#allocation4 + $0xc8] sm:$0xff]
    %v793 = vld [vmem:[#allocation4 + $0xd0] sm:$0xff]
    %v794 = vld [vmem:[#allocation4 + $0xd8] sm:$0xf]
    %v795 = vld [vmem:[#allocation4 + $0xdc] sm:$0xff]
    %v796 = vld [vmem:[#allocation4 + $0xe4] sm:$0xff]
    %v797 = vld [vmem:[#allocation4 + $0xec] sm:$0xf]
    %v798 = vld [vmem:[#allocation4 + $0xf0] sm:$0xff]
    %v799 = vld [vmem:[#allocation4 + $0xf8] sm:$0xff]
    %v800 = vld [vmem:[#allocation4 + $0x100] sm:$0xf]
    %v801 = vld [vmem:[#allocation4 + $0x104] sm:$0xff]
    %v802 = vld [vmem:[#allocation4 + $0x10c] sm:$0xff]
    %v803 = vld [vmem:[#allocation4 + $0x114] sm:$0xf]
    %v804 = vld [vmem:[#allocation4 + $0x118] sm:$0xff]
    %v805 = vld [vmem:[#allocation4 + $0x120] sm:$0xff]
    %v806 = vld [vmem:[#allocation4 + $0x128] sm:$0xf]
    %v807 = vld [vmem:[#allocation4 + $0x12c] sm:$0xff]
    %v808 = vld [vmem:[#allocation4 + $0x134] sm:$0xff]
    %v809 = vld [vmem:[#allocation4 + $0x13c] sm:$0xf]
    %v810 = vld [vmem:[%s4] sm:$0x1f]
    %v812 = vlaneseq
    %v813 = vshrl.u32 %v812, 7
    %v814 = vsub.s32 0, %v813
    %v815 = vrot.slane %v810, %v814
    %v816 = vlaneseq
    %v817 = vshrl.u32 %v816, 7
    %v818 = vsub.s32 1, %v817
    %v819 = vrot.slane %v810, %v818
    %v820 = vlaneseq
    %v821 = vshrl.u32 %v820, 7
    %v822 = vsub.s32 2, %v821
    %v823 = vrot.slane %v810, %v822
    %v824 = vlaneseq
    %v825 = vshrl.u32 %v824, 7
    %v826 = vsub.s32 3, %v825
    %v827 = vrot.slane %v810, %v826
    %v828 = vlaneseq
    %v829 = vshrl.u32 %v828, 7
    %v830 = vsub.s32 4, %v829
    %v831 = vrot.slane %v810, %v830
    %v885 = vunpack.c.l.b16 %v762
    %v886 = vunpack.c.h.b16 %v762
    %v887 = vunpack.c.l.b16 %v763
    %v888 = vunpack.c.h.b16 %v763
    %v889 = vunpack.c.l.b16 %v764
    %v890 = vunpack.c.l.b16 %v765
    %v891 = vunpack.c.h.b16 %v765
    %v892 = vunpack.c.l.b16 %v766
    %v893 = vunpack.c.h.b16 %v766
    %v894 = vunpack.c.l.b16 %v767
    %v895 = vunpack.c.l.b16 %v768
    %v896 = vunpack.c.h.b16 %v768
    %v897 = vunpack.c.l.b16 %v769
    %v898 = vunpack.c.h.b16 %v769
    %v899 = vunpack.c.l.b16 %v770
    %v900 = vunpack.c.l.b16 %v771
    %v901 = vunpack.c.h.b16 %v771
    %v902 = vunpack.c.l.b16 %v772
    %v903 = vunpack.c.h.b16 %v772
    %v904 = vunpack.c.l.b16 %v773
    %v905 = vunpack.c.l.b16 %v774
    %v906 = vunpack.c.h.b16 %v774
    %v907 = vunpack.c.l.b16 %v775
    %v908 = vunpack.c.h.b16 %v775
    %v909 = vunpack.c.l.b16 %v776
    %v910 = vunpack.c.l.b16 %v777
    %v911 = vunpack.c.h.b16 %v777
    %v912 = vunpack.c.l.b16 %v778
    %v913 = vunpack.c.h.b16 %v778
    %v914 = vunpack.c.l.b16 %v779
    %v915 = vunpack.c.l.b16 %v780
    %v916 = vunpack.c.h.b16 %v780
    %v917 = vunpack.c.l.b16 %v781
    %v918 = vunpack.c.h.b16 %v781
    %v919 = vunpack.c.l.b16 %v782
    %v920 = vunpack.c.l.b16 %v783
    %v921 = vunpack.c.h.b16 %v783
    %v922 = vunpack.c.l.b16 %v784
    %v923 = vunpack.c.h.b16 %v784
    %v924 = vunpack.c.l.b16 %v785
    %v925 = vunpack.c.l.b16 %v786
    %v926 = vunpack.c.h.b16 %v786
    %v927 = vunpack.c.l.b16 %v787
    %v928 = vunpack.c.h.b16 %v787
    %v929 = vunpack.c.l.b16 %v788
    %v930 = vunpack.c.l.b16 %v789
    %v931 = vunpack.c.h.b16 %v789
    %v932 = vunpack.c.l.b16 %v790
    %v933 = vunpack.c.h.b16 %v790
    %v934 = vunpack.c.l.b16 %v791
    %v935 = vunpack.c.l.b16 %v792
    %v936 = vunpack.c.h.b16 %v792
    %v937 = vunpack.c.l.b16 %v793
    %v938 = vunpack.c.h.b16 %v793
    %v939 = vunpack.c.l.b16 %v794
    %v940 = vunpack.c.l.b16 %v795
    %v941 = vunpack.c.h.b16 %v795
    %v942 = vunpack.c.l.b16 %v796
    %v943 = vunpack.c.h.b16 %v796
    %v944 = vunpack.c.l.b16 %v797
    %v945 = vunpack.c.l.b16 %v798
    %v946 = vunpack.c.h.b16 %v798
    %v947 = vunpack.c.l.b16 %v799
    %v948 = vunpack.c.h.b16 %v799
    %v949 = vunpack.c.l.b16 %v800
    %v950 = vunpack.c.l.b16 %v801
    %v951 = vunpack.c.h.b16 %v801
    %v952 = vunpack.c.l.b16 %v802
    %v953 = vunpack.c.h.b16 %v802
    %v954 = vunpack.c.l.b16 %v803
    %v955 = vunpack.c.l.b16 %v804
    %v956 = vunpack.c.h.b16 %v804
    %v957 = vunpack.c.l.b16 %v805
    %v958 = vunpack.c.h.b16 %v805
    %v959 = vunpack.c.l.b16 %v806
    %v960 = vunpack.c.l.b16 %v807
    %v961 = vunpack.c.h.b16 %v807
    %v962 = vunpack.c.l.b16 %v808
    %v963 = vunpack.c.h.b16 %v808
    %v964 = vunpack.c.l.b16 %v809
    %v965 = vpack.c.b16 %v890, %v885
    %v966 = vpack.c.b16 %v891, %v886
    %v967 = vpack.c.b16 %v892, %v887
    %v968 = vpack.c.b16 %v893, %v888
    %v969 = vpack.c.b16 %v894, %v889
    %v970 = vpack.c.b16 %v900, %v895
    %v971 = vpack.c.b16 %v901, %v896
    %v972 = vpack.c.b16 %v902, %v897
    %v973 = vpack.c.b16 %v903, %v898
    %v974 = vpack.c.b16 %v904, %v899
    %v975 = vpack.c.b16 %v910, %v905
    %v976 = vpack.c.b16 %v911, %v906
    %v977 = vpack.c.b16 %v912, %v907
    %v978 = vpack.c.b16 %v913, %v908
    %v979 = vpack.c.b16 %v914, %v909
    %v980 = vpack.c.b16 %v920, %v915
    %v981 = vpack.c.b16 %v921, %v916
    %v982 = vpack.c.b16 %v922, %v917
    %v983 = vpack.c.b16 %v923, %v918
    %v984 = vpack.c.b16 %v924, %v919
    %v985 = vpack.c.b16 %v930, %v925
    %v986 = vpack.c.b16 %v931, %v926
    %v987 = vpack.c.b16 %v932, %v927
    %v988 = vpack.c.b16 %v933, %v928
    %v989 = vpack.c.b16 %v934, %v929
    %v990 = vpack.c.b16 %v940, %v935
    %v991 = vpack.c.b16 %v941, %v936
    %v992 = vpack.c.b16 %v942, %v937
    %v993 = vpack.c.b16 %v943, %v938
    %v994 = vpack.c.b16 %v944, %v939
    %v995 = vpack.c.b16 %v950, %v945
    %v996 = vpack.c.b16 %v951, %v946
    %v997 = vpack.c.b16 %v952, %v947
    %v998 = vpack.c.b16 %v953, %v948
    %v999 = vpack.c.b16 %v954, %v949
    %v1000 = vpack.c.b16 %v960, %v955
    %v1001 = vpack.c.b16 %v961, %v956
    %v1002 = vpack.c.b16 %v962, %v957
    %v1003 = vpack.c.b16 %v963, %v958
    %v1004 = vpack.c.b16 %v964, %v959
    %1045 = vmatprep.subr.bf16.mxu0 %v1001
    %1046 = vmatpush1.bf16.msra.mxu0 %v1000
    %1047 = vmatprep.subr.bf16.mxu0 %v996
    %1048 = vmatpush1.bf16.msra.mxu0 %v995
    %1049 = vmatprep.subr.bf16.mxu0 %v991
    %1050 = vmatpush1.bf16.msra.mxu0 %v990
    %1051 = vmatprep.subr.bf16.mxu0 %v986
    %1052 = vmatpush1.bf16.msra.mxu0 %v985
    %1053 = vmatprep.subr.bf16.mxu0 %v981
    %1054 = vmatpush1.bf16.msra.mxu0 %v980
    %1055 = vmatprep.subr.bf16.mxu0 %v976
    %1056 = vmatpush1.bf16.msra.mxu0 %v975
    %1057 = vmatprep.subr.bf16.mxu0 %v971
    %1058 = vmatpush1.bf16.msra.mxu0 %v970
    %1059 = vmatprep.subr.bf16.mxu0 %v966
    %1060 = vmatpush1.bf16.msra.mxu0 %v965
    %1061 = vmatprep.subr.bf16.mxu0 0
    %1062 = vmatpush2.bf16.msra.mxu0 0
    %1063 = vmatprep.subr.bf16.mxu0 0
    %1064 = vmatpush2.bf16.msra.mxu0 0
    %1065 = vmatprep.subr.bf16.mxu0 0
    %1066 = vmatpush2.bf16.msra.mxu0 0
    %1067 = vmatprep.subr.bf16.mxu0 0
    %1068 = vmatpush2.bf16.msra.mxu0 0
    %1069 = vmatprep.subr.bf16.mxu0 0
    %1070 = vmatpush2.bf16.msra.mxu0 0
    %1071 = vmatprep.subr.bf16.mxu0 0
    %1072 = vmatpush2.bf16.msra.mxu0 0
    %1073 = vmatprep.subr.bf16.mxu0 0
    %1074 = vmatpush2.bf16.msra.mxu0 0
    %1075 = vmatprep.subr.bf16.mxu0 0
    %1076 = vmatpush2.bf16.msra.mxu0 0
    %1077 = vmatprep.mubr.bf16.mxu0 0
    %1078 = vmatmul.mubr.bf16.gmra.mxu0 %v761
    %v1079 = vpop.f32.mrf.mxu0
    %v1080 = vadd.f32 %v815, %v1079
    %v1081 = vpop.f32.mrf.mxu0
    %v1082 = vadd.f32 %v819, %v1081
    %v1083 = vpop.f32.mrf.mxu0
    %v1084 = vadd.f32 %v815, %v1083
    %v1085 = vpop.f32.mrf.mxu0
    %v1086 = vadd.f32 %v819, %v1085
    %1087 = vdwg.mxu0
    %1088 = vmatprep.subr.bf16.mxu0 %v1003
    %1089 = vmatpush1.bf16.msra.mxu0 %v1002
    %1090 = vmatprep.subr.bf16.mxu0 %v998
    %1091 = vmatpush1.bf16.msra.mxu0 %v997
    %1092 = vmatprep.subr.bf16.mxu0 %v993
    %1093 = vmatpush1.bf16.msra.mxu0 %v992
    %1094 = vmatprep.subr.bf16.mxu0 %v988
    %1095 = vmatpush1.bf16.msra.mxu0 %v987
    %1096 = vmatprep.subr.bf16.mxu0 %v983
    %1097 = vmatpush1.bf16.msra.mxu0 %v982
    %1098 = vmatprep.subr.bf16.mxu0 %v978
    %1099 = vmatpush1.bf16.msra.mxu0 %v977
    %1100 = vmatprep.subr.bf16.mxu0 %v973
    %1101 = vmatpush1.bf16.msra.mxu0 %v972
    %1102 = vmatprep.subr.bf16.mxu0 %v968
    %1103 = vmatpush1.bf16.msra.mxu0 %v967
    %1104 = vmatprep.subr.bf16.mxu0 0
    %1105 = vmatpush2.bf16.msra.mxu0 0
    %1106 = vmatprep.subr.bf16.mxu0 0
    %1107 = vmatpush2.bf16.msra.mxu0 0
    %1108 = vmatprep.subr.bf16.mxu0 0
    %1109 = vmatpush2.bf16.msra.mxu0 0
    %1110 = vmatprep.subr.bf16.mxu0 0
    %1111 = vmatpush2.bf16.msra.mxu0 0
    %1112 = vmatprep.subr.bf16.mxu0 0
    %1113 = vmatpush2.bf16.msra.mxu0 0
    %1114 = vmatprep.subr.bf16.mxu0 0
    %1115 = vmatpush2.bf16.msra.mxu0 0
    %1116 = vmatprep.subr.bf16.mxu0 0
    %1117 = vmatpush2.bf16.msra.mxu0 0
    %1118 = vmatprep.subr.bf16.mxu0 0
    %1119 = vmatpush2.bf16.msra.mxu0 0
    %1120 = vmatprep.mubr.bf16.mxu0 0
    %1121 = vmatmul.mubr.bf16.gmra.mxu0 %v761
    %v1122 = vpop.f32.mrf.mxu0
    %v1123 = vadd.f32 %v823, %v1122
    %v1124 = vpop.f32.mrf.mxu0
    %v1125 = vadd.f32 %v827, %v1124
    %v1126 = vpop.f32.mrf.mxu0
    %v1127 = vadd.f32 %v823, %v1126
    %v1128 = vpop.f32.mrf.mxu0
    %v1129 = vadd.f32 %v827, %v1128
    %1130 = vdwg.mxu0
    %1131 = vmatprep.subr.bf16.mxu0 0
    %1132 = vmatpush1.bf16.msra.mxu0 %v1004
    %1133 = vmatprep.subr.bf16.mxu0 0
    %1134 = vmatpush1.bf16.msra.mxu0 %v999
    %1135 = vmatprep.subr.bf16.mxu0 0
    %1136 = vmatpush1.bf16.msra.mxu0 %v994
    %1137 = vmatprep.subr.bf16.mxu0 0
    %1138 = vmatpush1.bf16.msra.mxu0 %v989
    %1139 = vmatprep.subr.bf16.mxu0 0
    %1140 = vmatpush1.bf16.msra.mxu0 %v984
    %1141 = vmatprep.subr.bf16.mxu0 0
    %1142 = vmatpush1.bf16.msra.mxu0 %v979
    %1143 = vmatprep.subr.bf16.mxu0 0
    %1144 = vmatpush1.bf16.msra.mxu0 %v974
    %1145 = vmatprep.subr.bf16.mxu0 0
    %1146 = vmatpush1.bf16.msra.mxu0 %v969
    %1147 = vmatprep.subr.bf16.mxu0 0
    %1148 = vmatpush2.bf16.msra.mxu0 0
    %1149 = vmatprep.subr.bf16.mxu0 0
    %1150 = vmatpush2.bf16.msra.mxu0 0
    %1151 = vmatprep.subr.bf16.mxu0 0
    %1152 = vmatpush2.bf16.msra.mxu0 0
    %1153 = vmatprep.subr.bf16.mxu0 0
    %1154 = vmatpush2.bf16.msra.mxu0 0
    %1155 = vmatprep.subr.bf16.mxu0 0
    %1156 = vmatpush2.bf16.msra.mxu0 0
    %1157 = vmatprep.subr.bf16.mxu0 0
    %1158 = vmatpush2.bf16.msra.mxu0 0
    %1159 = vmatprep.subr.bf16.mxu0 0
    %1160 = vmatpush2.bf16.msra.mxu0 0
    %1161 = vmatprep.subr.bf16.mxu0 0
    %1162 = vmatpush2.bf16.msra.mxu0 0
    %1163 = vmatprep.mubr.bf16.mxu0 0
    %1164 = vmatmul.mubr.bf16.gmra.mxu0 %v761
    %v1165 = vpop.f32.mrf.mxu0
    %v1166 = vadd.f32 %v831, %v1165
    %v1167 = vpop.f32.mrf.mxu0
    %v1168 = vpop.f32.mrf.mxu0
    %v1169 = vadd.f32 %v831, %v1168
    %v1170 = vpop.f32.mrf.mxu0
    %1171 = vdwg.mxu0
    %1172 = vst [vmem:[%s5] sm:$0xff] %v1080
    %1173 = vst [vmem:[%s5 + $0x8] sm:$0xff] %v1082
    %1174 = vst [vmem:[%s5 + $0x10] sm:$0xff] %v1084
    %1175 = vst [vmem:[%s5 + $0x18] sm:$0xff] %v1086
    %1176 = vst [vmem:[%s6] sm:$0xff] %v1123
    %1177 = vst [vmem:[%s6 + $0x8] sm:$0xff] %v1127
    %1178 = vst [vmem:[%s7] sm:$0xff] %v1125
    %1179 = vst [vmem:[%s7 + $0x8] sm:$0xff] %v1166
    %1180 = vst [vmem:[%s7 + $0x10] sm:$0xff] %v1129
    %1181 = vst [vmem:[%s7 + $0x18] sm:$0xff] %v1169
    // Predicated region
    $region30: #{multi_task_forward.1} parent=1 // pred_check
      _
    $region31: #{multi_task_forward.1} parent=1 // pred_check_branch
      %1183 = sbr.rel (0) target = $region33
    $region32: #{multi_task_forward.1} parent=1 // pred_region
      _
    $region33: #{multi_task_forward.1} parent=1 // pred_fallthru
      _
    // Predicated region
    $region34: #{multi_task_forward.1} parent=1 // pred_check
      _
    $region35: #{multi_task_forward.1} parent=1 // pred_check_branch
      %1185 = sbr.rel (0) target = $region37
    $region36: #{multi_task_forward.1} parent=1 // pred_region
      _
    $region37: #{multi_task_forward.1} parent=1 // pred_fallthru
      _
    // Predicated region
    $region38: #{multi_task_forward.1} parent=1 // pred_check
      _
    $region39: #{multi_task_forward.1} parent=1 // pred_check_branch
      %1187 = sbr.rel (0) target = $region41
    $region40: #{multi_task_forward.1} parent=1 // pred_region
      _
    $region41: #{multi_task_forward.1} parent=1 // pred_fallthru
      _
    // Predicated region
    $region42: #{multi_task_forward.1} parent=1 // pred_check
      _
    $region43: #{multi_task_forward.1} parent=1 // pred_check_branch
      %1189 = sbr.rel (0) target = $region45
    $region44: #{multi_task_forward.1} parent=1 // pred_region
      _
    $region45: #{multi_task_forward.1} parent=1 // pred_fallthru
      _
    // Predicated region
    $region46: #{multi_task_forward.1} parent=1 // pred_check
      _
    $region47: #{multi_task_forward.1} parent=1 // pred_check_branch
      %1191 = sbr.rel (0) target = $region49
    $region48: #{multi_task_forward.1} parent=1 // pred_region
      _
    $region49: #{multi_task_forward.1} parent=1 // pred_fallthru
      _
    // Predicated region
    $region50: #{multi_task_forward.1} parent=1 // pred_check
      _
    $region51: #{multi_task_forward.1} parent=1 // pred_check_branch
      %1193 = sbr.rel (0) target = $region53
    $region52: #{multi_task_forward.1} parent=1 // pred_region
      _
    $region53: #{multi_task_forward.1} parent=1 // pred_fallthru
      _
    %1194 = vsyncpa [#allocation3], 1
    %1195 = vsyncpa [#allocation5], 1

</llo_original>
